<compile_context>
chip_gen: v5e
topology: v5e:2x2
jax: 0.10.0
libtpu: 0.0.40
codegen_flags: <defaults>
</compile_context>

<pallas_src>
import functools

import jax
import jax.numpy as jnp
from jax.experimental import pallas as pl
from jax.experimental.pallas import tpu as pltpu

SIGMA = 0.2  # PVAE(sigma=0.2); only scales recon_loss, which does not feed the returned loss.


def _round_up(x, m):
    return (x + m - 1) // m * m


def _pvae_kernel(df_ref, db_ref, wpack_ref, bpack_ref, out_ref, *,
                 fin, h, dz, hd, ct, off_wh, off_wd2, row_wd1):
    # ---- streamed per-sample slabs (one batch block) ----
    time_term = df_ref[:, 0:ct]                      # gamma*sin(time) + bd2, f32
    data = df_ref[:, ct:2 * ct]                      # f32
    eps = df_ref[:, 2 * ct:2 * ct + dz]              # f32

    feat = db_ref[:, 0:fin]                          # bf16 (matmul operand only)
    mask = db_ref[:, fin:fin + ct].astype(jnp.float32)   # 0/1 exact in bf16

    # ---- resident packed weights (bf16) and biases (f32) ----
    w1 = wpack_ref[0:fin, 0:h]
    wh = wpack_ref[0:h, off_wh:off_wh + 2 * dz]      # fused [wmu | wlv]
    wd2 = wpack_ref[0:hd, off_wd2:off_wd2 + ct]
    wd1 = wpack_ref[row_wd1:row_wd1 + dz, 0:hd]

    b1 = bpack_ref[0:1, 0:h]
    bh = bpack_ref[1:2, 0:2 * dz]                    # fused [bmu | blv]
    bd1 = bpack_ref[2:3, 0:hd]

    bf16 = jnp.bfloat16

    # ---------------- encoder: z, mu, logvar ----------------
    hidden = jnp.maximum(
        jnp.dot(feat, w1, preferred_element_type=jnp.float32) + b1, 0.0)
    heads = jnp.dot(hidden.astype(bf16), wh,
                    preferred_element_type=jnp.float32) + bh
    mu = heads[:, 0:dz]
    logvar = heads[:, dz:2 * dz]
    z = mu + eps * jnp.exp(0.5 * logvar)

    # ---------------- decoder ----------------
    hdec = jnp.maximum(
        jnp.dot(z.astype(bf16), wd1, preferred_element_type=jnp.float32) + bd1, 0.0)
    x_recon = jnp.dot(hdec.astype(bf16), wd2,
                      preferred_element_type=jnp.float32) + time_term

    # ---------------- masked-MSE partial sum for this block ----------------
    diff = (x_recon - data) * mask                   # == x*m - d*m for a 0/1 mask
    block_sum = jnp.sum(diff * diff)                 # padded rows have mask=0 -> contribute 0
    out_ref[...] = jnp.broadcast_to(block_sum, (1, 8, 128))


def pvae_forward(data, time, mask, feat, eps, params, *, block_b=512):
    (w1, b1, wmu, bmu, wlv, blv, wd1, bd1, wd2, bd2, gamma) = params
    B, C, T = data.shape
    ct = C * T
    fin, h = w1.shape
    dz = wmu.shape[1]
    hd = wd1.shape[1]

    # ---- batch tiling: blocks of up to block_b rows (multiple of 16), zero-pad B ----
    bb = block_b if B >= block_b else _round_up(B, 16)
    bb = _round_up(bb, 16)
    bp = _round_up(B, bb)
    nblk = bp // bb

    # ---- streamed slabs, packed at native widths (no 128-lane padding in HBM) ----
    time_term = gamma * jnp.sin(time.reshape(B, ct)) + bd2   # fold decoder bias + sin term
    wf = 2 * ct + dz
    df = jnp.zeros((bp, wf), jnp.float32)
    df = df.at[:B, 0:ct].set(time_term.astype(jnp.float32))
    df = df.at[:B, ct:2 * ct].set(data.reshape(B, ct).astype(jnp.float32))
    df = df.at[:B, 2 * ct:2 * ct + dz].set(eps.astype(jnp.float32))

    wb = fin + ct
    db = jnp.zeros((bp, wb), jnp.bfloat16)
    db = db.at[:B, 0:fin].set(feat.astype(jnp.bfloat16))
    db = db.at[:B, fin:fin + ct].set(mask.reshape(B, ct).astype(jnp.bfloat16))

    # ---- resident weight / bias packs ----
    off_wh = h
    off_wd2 = h + 2 * dz
    wcols = max(_round_up(off_wd2 + ct, 128), 128)
    row_wd1 = _round_up(max(fin, h, hd), 16)
    wrows = _round_up(row_wd1 + dz, 16)

    wpack = jnp.zeros((wrows, wcols), jnp.float32)
    wpack = wpack.at[0:fin, 0:h].set(w1)
    wpack = wpack.at[0:h, off_wh:off_wh + dz].set(wmu)
    wpack = wpack.at[0:h, off_wh + dz:off_wh + 2 * dz].set(wlv)
    wpack = wpack.at[0:hd, off_wd2:off_wd2 + ct].set(wd2)
    wpack = wpack.at[row_wd1:row_wd1 + dz, 0:hd].set(wd1)
    wpack = wpack.astype(jnp.bfloat16)

    bcols = max(h, 2 * dz, hd)
    bpack = jnp.zeros((8, bcols), jnp.float32)
    bpack = bpack.at[0, 0:h].set(b1[0])
    bpack = bpack.at[1, 0:dz].set(bmu[0])
    bpack = bpack.at[1, dz:2 * dz].set(blv[0])
    bpack = bpack.at[2, 0:hd].set(bd1[0])

    kernel = functools.partial(
        _pvae_kernel, fin=fin, h=h, dz=dz, hd=hd, ct=ct,
        off_wh=off_wh, off_wd2=off_wd2, row_wd1=row_wd1)

    out = pl.pallas_call(
        kernel,
        out_shape=jax.ShapeDtypeStruct((nblk, 8, 128), jnp.float32),
        grid=(nblk,),
        in_specs=[
            pl.BlockSpec((bb, wf), lambda i: (i, 0)),        # streamed f32 slab
            pl.BlockSpec((bb, wb), lambda i: (i, 0)),        # streamed bf16 slab
            pl.BlockSpec((wrows, wcols), lambda i: (0, 0)),  # resident weights
            pl.BlockSpec((8, bcols), lambda i: (0, 0)),      # resident biases
        ],
        out_specs=pl.BlockSpec((1, 8, 128), lambda i: (i, 0, 0)),
        compiler_params=pltpu.CompilerParams(
            dimension_semantics=("parallel",)),
    )(df, db, wpack, bpack)

    # Per-block SUMS; divide by the TRUE batch size here (padding-safe mean).
    return jnp.sum(out[:, 0, 0]) / B


def pvae_reference(data, time, mask, feat, eps, params):
    """Pure-JAX reference with identical bf16-operand / f32-accumulate matmuls."""
    (w1, b1, wmu, bmu, wlv, blv, wd1, bd1, wd2, bd2, gamma) = params
    B, C, T = data.shape
    bf16 = jnp.bfloat16

    def mm(a, w):
        return jnp.dot(a.astype(bf16), w.astype(bf16),
                       preferred_element_type=jnp.float32)

    h = jnp.maximum(mm(feat, w1) + b1, 0.0)
    mu = mm(h, wmu) + bmu
    logvar = mm(h, wlv) + blv
    z = mu + eps * jnp.exp(0.5 * logvar)
    hd = jnp.maximum(mm(z, wd1) + bd1, 0.0)
    x_recon = mm(hd, wd2) + bd2 + gamma * jnp.sin(time.reshape(B, C * T))
    data_f = data.reshape(B, C * T)
    mask_f = mask.reshape(B, C * T)
    # original triple-mask form (equals the kernel's simplified form for 0/1 mask)
    diff = x_recon * mask_f - data_f * mask_f
    mse = jnp.sum(diff * diff * mask_f, axis=1)
    return jnp.mean(mse)


if __name__ == "__main__":
    key = jax.random.PRNGKey(0)
    B, C, T = 2, 4, 16
    Fin, H, Dz, Hd = 32, 32, 16, 32
    CT = C * T

    ks = jax.random.split(key, 20)
    data = jax.random.normal(ks[0], (B, C, T), jnp.float32)
    time = jax.random.uniform(ks[1], (B, C, T), jnp.float32) * 6.0
    mask = (jax.random.uniform(ks[2], (B, C, T)) > 0.5).astype(jnp.float32)
    feat = jax.random.normal(ks[3], (B, Fin), jnp.float32)      # stands in for cconv_graph features
    eps = jax.random.normal(ks[4], (B, Dz), jnp.float32)        # reparameterization noise

    def init(k, shape, scale=0.1):
        return scale * jax.random.normal(k, shape, jnp.float32)

    params = (
        init(ks[5], (Fin, H)), init(ks[6], (1, H)),     # encoder hidden
        init(ks[7], (H, Dz)), init(ks[8], (1, Dz)),     # mu head
        init(ks[9], (H, Dz)), init(ks[10], (1, Dz)),    # logvar head
        init(ks[11], (Dz, Hd)), init(ks[12], (1, Hd)),  # decoder hidden
        init(ks[13], (Hd, CT)), init(ks[14], (1, CT)),  # decoder output
        init(ks[15], (1, CT)),                          # time-modulation gain
    )

    loss = pvae_forward(data, time, mask, feat, eps, params)
    jax.block_until_ready(loss)

    ref = pvae_reference(data, time, mask, feat, eps, params)
    # bf16 matmul operands: kernel and reference use identical casts; remaining
    # differences are f32 accumulation / addition order at cast boundaries.
    assert jnp.allclose(loss, ref, rtol=5e-3, atol=5e-3), (loss, ref)
    print("KERNEL_OK")
</pallas_src>

<mosaic_0001>
module attributes {stable_mosaic.version = 11 : i64} {
  func.func @_pvae_kernel(%arg0: i32, %arg1: memref<16x144xf32, #tpu.memory_space<vmem>>, %arg2: memref<16x96xbf16, #tpu.memory_space<vmem>>, %arg3: memref<48x128xbf16, #tpu.memory_space<vmem>>, %arg4: memref<8x32xf32, #tpu.memory_space<vmem>>, %arg5: memref<1x8x128xf32, #tpu.memory_space<vmem>>) attributes {dimension_semantics = [#tpu.dimension_semantics<parallel>], iteration_bounds = array<i64: 1>, scalar_prefetch = 0 : i64, scratch_operands = 0 : i64, tpu.core_type = #tpu.core_type<tc>, window_params = [{transform_indices = @transform_0, window_bounds = array<i64: 16, 144>}, {transform_indices = @transform_1, window_bounds = array<i64: 16, 96>}, {pipeline_mode = #tpu.pipeline_mode<synchronous>, transform_indices = @transform_2, window_bounds = array<i64: 48, 128>}, {pipeline_mode = #tpu.pipeline_mode<synchronous>, transform_indices = @transform_3, window_bounds = array<i64: 8, 32>}, {transform_indices = @transform_4, window_bounds = array<i64: 1, 8, 128>}]} {
    %c0 = arith.constant 0 : index
    %c0_0 = arith.constant 0 : index
    %0 = vector.load %arg1[%c0, %c0_0] : memref<16x144xf32, #tpu.memory_space<vmem>>, vector<16x64xf32>
    %c0_1 = arith.constant 0 : index
    %c64 = arith.constant 64 : index
    %1 = vector.load %arg1[%c0_1, %c64] : memref<16x144xf32, #tpu.memory_space<vmem>>, vector<16x64xf32>
    %c0_2 = arith.constant 0 : index
    %c128 = arith.constant 128 : index
    %2 = vector.load %arg1[%c0_2, %c128] : memref<16x144xf32, #tpu.memory_space<vmem>>, vector<16x16xf32>
    %c0_3 = arith.constant 0 : index
    %c0_4 = arith.constant 0 : index
    %3 = vector.load %arg2[%c0_3, %c0_4] : memref<16x96xbf16, #tpu.memory_space<vmem>>, vector<16x32xbf16>
    %c0_5 = arith.constant 0 : index
    %c32 = arith.constant 32 : index
    %4 = vector.load %arg2[%c0_5, %c32] : memref<16x96xbf16, #tpu.memory_space<vmem>>, vector<16x64xbf16>
    %5 = arith.extf %4 : vector<16x64xbf16> to vector<16x64xf32>
    %c0_6 = arith.constant 0 : index
    %c0_7 = arith.constant 0 : index
    %6 = vector.load %arg3[%c0_6, %c0_7] : memref<48x128xbf16, #tpu.memory_space<vmem>>, vector<32x32xbf16>
    %c0_8 = arith.constant 0 : index
    %c32_9 = arith.constant 32 : index
    %7 = vector.load %arg3[%c0_8, %c32_9] : memref<48x128xbf16, #tpu.memory_space<vmem>>, vector<32x32xbf16>
    %c0_10 = arith.constant 0 : index
    %c64_11 = arith.constant 64 : index
    %8 = vector.load %arg3[%c0_10, %c64_11] : memref<48x128xbf16, #tpu.memory_space<vmem>>, vector<32x64xbf16>
    %c32_12 = arith.constant 32 : index
    %c0_13 = arith.constant 0 : index
    %9 = vector.load %arg3[%c32_12, %c0_13] : memref<48x128xbf16, #tpu.memory_space<vmem>>, vector<16x32xbf16>
    %c0_14 = arith.constant 0 : index
    %c0_15 = arith.constant 0 : index
    %10 = vector.load %arg4[%c0_14, %c0_15] : memref<8x32xf32, #tpu.memory_space<vmem>>, vector<1x32xf32>
    %c1 = arith.constant 1 : index
    %c0_16 = arith.constant 0 : index
    %11 = vector.load %arg4[%c1, %c0_16] : memref<8x32xf32, #tpu.memory_space<vmem>>, vector<1x32xf32>
    %c2 = arith.constant 2 : index
    %c0_17 = arith.constant 0 : index
    %12 = vector.load %arg4[%c2, %c0_17] : memref<8x32xf32, #tpu.memory_space<vmem>>, vector<1x32xf32>
    %cst = arith.constant dense<0.000000e+00> : vector<16x32xf32>
    %13 = tpu.matmul %3, %6, %cst {dimension_numbers = #tpu.dot_dimension_numbers<[1], [0], [0], [1], [0, 0, 1, 1], [], []>} : vector<16x32xbf16>, vector<32x32xbf16>, vector<16x32xf32> -> vector<16x32xf32>
    %14 = vector.broadcast %10 : vector<1x32xf32> to vector<16x32xf32>
    %15 = arith.addf %13, %14 : vector<16x32xf32>
    %cst_18 = arith.constant 0.000000e+00 : f32
    %16 = vector.broadcast %cst_18 : f32 to vector<16x32xf32>
    %17 = arith.maximumf %15, %16 : vector<16x32xf32>
    %18 = arith.truncf %17 : vector<16x32xf32> to vector<16x32xbf16>
    %cst_19 = arith.constant dense<0.000000e+00> : vector<16x32xf32>
    %19 = tpu.matmul %18, %7, %cst_19 {dimension_numbers = #tpu.dot_dimension_numbers<[1], [0], [0], [1], [0, 0, 1, 1], [], []>} : vector<16x32xbf16>, vector<32x32xbf16>, vector<16x32xf32> -> vector<16x32xf32>
    %20 = vector.broadcast %11 : vector<1x32xf32> to vector<16x32xf32>
    %21 = arith.addf %19, %20 : vector<16x32xf32>
    %22 = vector.extract_strided_slice %21 {offsets = [0, 0], sizes = [16, 16], strides = [1, 1]} : vector<16x32xf32> to vector<16x16xf32>
    %23 = vector.extract_strided_slice %21 {offsets = [0, 16], sizes = [16, 16], strides = [1, 1]} : vector<16x32xf32> to vector<16x16xf32>
    %cst_20 = arith.constant 5.000000e-01 : f32
    %24 = vector.broadcast %cst_20 : f32 to vector<16x16xf32>
    %25 = arith.mulf %24, %23 : vector<16x16xf32>
    %26 = math.exp %25 : vector<16x16xf32>
    %27 = arith.mulf %2, %26 : vector<16x16xf32>
    %28 = arith.addf %22, %27 : vector<16x16xf32>
    %29 = arith.truncf %28 : vector<16x16xf32> to vector<16x16xbf16>
    %cst_21 = arith.constant dense<0.000000e+00> : vector<16x32xf32>
    %30 = tpu.matmul %29, %9, %cst_21 {dimension_numbers = #tpu.dot_dimension_numbers<[1], [0], [0], [1], [0, 0, 1, 1], [], []>} : vector<16x16xbf16>, vector<16x32xbf16>, vector<16x32xf32> -> vector<16x32xf32>
    %31 = vector.broadcast %12 : vector<1x32xf32> to vector<16x32xf32>
    %32 = arith.addf %30, %31 : vector<16x32xf32>
    %cst_22 = arith.constant 0.000000e+00 : f32
    %33 = vector.broadcast %cst_22 : f32 to vector<16x32xf32>
    %34 = arith.maximumf %32, %33 : vector<16x32xf32>
    %35 = arith.truncf %34 : vector<16x32xf32> to vector<16x32xbf16>
    %cst_23 = arith.constant dense<0.000000e+00> : vector<16x64xf32>
    %36 = tpu.matmul %35, %8, %cst_23 {dimension_numbers = #tpu.dot_dimension_numbers<[1], [0], [0], [1], [0, 0, 1, 1], [], []>} : vector<16x32xbf16>, vector<32x64xbf16>, vector<16x64xf32> -> vector<16x64xf32>
    %37 = arith.addf %36, %0 : vector<16x64xf32>
    %38 = arith.subf %37, %1 : vector<16x64xf32>
    %39 = arith.mulf %38, %5 : vector<16x64xf32>
    %40 = arith.mulf %39, %39 : vector<16x64xf32>
    %41 = vector.shape_cast %40 : vector<16x64xf32> to vector<1x16x64xf32>
    %cst_24 = arith.constant dense<0.000000e+00> : vector<1xf32>
    %42 = vector.multi_reduction <add>, %41, %cst_24 [1, 2] : vector<1x16x64xf32> to vector<1xf32>
    %43 = vector.shape_cast %42 : vector<1xf32> to vector<1x1x1xf32>
    %44 = vector.extract %43[0, 0, 0] : f32 from vector<1x1x1xf32>
    %45 = vector.broadcast %44 : f32 to vector<1x8x128xf32>
    %c0_25 = arith.constant 0 : index
    %c0_26 = arith.constant 0 : index
    %c0_27 = arith.constant 0 : index
    %46 = vector.load %arg5[%c0_25, %c0_26, %c0_27] : memref<1x8x128xf32, #tpu.memory_space<vmem>>, vector<1x8x128xf32>
    tpu.vector_store %arg5[%c0_25, %c0_26, %c0_27], %45 {strides = array<i32>} : memref<1x8x128xf32, #tpu.memory_space<vmem>>, vector<1x8x128xf32>,
    return
  }
  func.func @transform_0(%arg0: i32) -> (i32, i32) {
    %c0_i32 = arith.constant 0 : i32
    %c0_i32_0 = arith.constant 0 : i32
    return %arg0, %c0_i32 : i32, i32
  }
  func.func @transform_1(%arg0: i32) -> (i32, i32) {
    %c0_i32 = arith.constant 0 : i32
    %c0_i32_0 = arith.constant 0 : i32
    return %arg0, %c0_i32 : i32, i32
  }
  func.func @transform_2(%arg0: i32) -> (i32, i32) {
    %c0_i32 = arith.constant 0 : i32
    %c0_i32_0 = arith.constant 0 : i32
    %c0_i32_1 = arith.constant 0 : i32
    return %c0_i32, %c0_i32_0 : i32, i32
  }
  func.func @transform_3(%arg0: i32) -> (i32, i32) {
    %c0_i32 = arith.constant 0 : i32
    %c0_i32_0 = arith.constant 0 : i32
    %c0_i32_1 = arith.constant 0 : i32
    return %c0_i32, %c0_i32_0 : i32, i32
  }
  func.func @transform_4(%arg0: i32) -> (i32, i32, i32) {
    %c0_i32 = arith.constant 0 : i32
    %c0_i32_0 = arith.constant 0 : i32
    %c0_i32_1 = arith.constant 0 : i32
    return %arg0, %c0_i32, %c0_i32_0 : i32, i32, i32
  }
}

</mosaic_0001>

<llo_original>
// kernel: tpu_custom_call.1
$region0: #{tpu_custom_call.1}
  #allocation0 [shape = 'u32[]', space=smem, size = 0x4, offset = 0x4, fixed_abs, tag = 'smem constant byte address 0x4 - core index']
  #allocation1 [shape = 'u32[72,128]{1,0:T(1,128)}', space=vmem, size = 0x9000, scoped, tag = 'internal scratch']
  %s0 = inlined_call_operand.hbm [shape: f32[16,144], index: 0, kind: input, shape index: {}]
  %s1 = inlined_call_operand.hbm [shape: bf16[16,96], index: 1, kind: input, shape index: {}]
  %s2 = inlined_call_operand.hbm [shape: bf16[48,128], index: 2, kind: input, shape index: {}]
  %s3 = inlined_call_operand.hbm [shape: f32[8,32], index: 3, kind: input, shape index: {}]
  %s4 = inlined_call_operand.hbm [shape: f32[1,8,128], index: 4, kind: output, shape index: {}]
  %s5 = sld [smem:[#allocation0]]
  $region42: #{tpu_custom_call.1} parent=0
    _
  %s7 = ssub.s32 1, %s5
  %s8 = scalar_select 0, %s7, %s5
  $region1: #{tpu_custom_call.1} parent=0
    #allocation2 [shape = 'u8[16384]{0}', space=vmem, size = 0x4000, scoped, tag = 'input window, operand 0, single buffered']
    #allocation3 [shape = 's32[1]{0}', space=sflag, size = 0x4, scoped, tag = 'scoped memory for tpu_custom_call.1']
    #allocation4 [shape = 's32[1]{0}', space=sflag, size = 0x4, scoped, tag = 'scoped memory for tpu_custom_call.1']
    #allocation5 [shape = 'u8[4096]{0}', space=vmem, size = 0x1000, scoped, tag = 'input window, operand 1, single buffered']
    #allocation6 [shape = 's32[1]{0}', space=sflag, size = 0x4, scoped, tag = 'scoped memory for tpu_custom_call.1']
    #allocation7 [shape = 'u8[12288]{0}', space=vmem, size = 0x3000, scoped, tag = 'input window, operand 2, single buffered']
    #allocation8 [shape = 'u8[4096]{0}', space=vmem, size = 0x1000, scoped, tag = 'input window, operand 3, single buffered']
    #allocation9 [shape = 's32[1]{0}', space=sflag, size = 0x4, scoped, tag = 'scoped memory for tpu_custom_call.1']
    #allocation10 [shape = 'u8[4096]{0}', space=vmem, size = 0x1000, scoped, tag = 'output window, operand 0, single buffered']
    %9 = vsyncpa [#allocation3], 0
    %10 = vsyncpa [#allocation6], 0
    %11 = vsyncpa [#allocation9], 0
    %12 = vsyncpa [#allocation4], 0
    // Predicated region
    $region2: #{tpu_custom_call.1} parent=1 // pred_check
      _
    $region3: #{tpu_custom_call.1} parent=1 // pred_check_branch
      %14 = sbr.rel (0) target = $region5
    $region4: #{tpu_custom_call.1} parent=1 // pred_region
      %16 = vsyncadd [#allocation3], 0
      %s17 = sshll.u32 %s0, 4
      %s18 = int_to_ptr.hbm [resolvable:$true] %s17
      %s19 = sshll.u32 [#allocation2], 4
      %s20 = int_to_ptr.vmem [resolvable:$true] %s19
      %25 = dma.hbm_to_vmem [thread:$0]  %s18, 512, %s20, [#allocation3], 256, 256, 16
    $region5: #{tpu_custom_call.1} parent=1 // pred_fallthru
      _
    // Predicated region
    $region6: #{tpu_custom_call.1} parent=1 // pred_check
      _
    $region7: #{tpu_custom_call.1} parent=1 // pred_check_branch
      %27 = sbr.rel (0) target = $region9
    $region8: #{tpu_custom_call.1} parent=1 // pred_region
      %29 = vsyncadd [#allocation6], 0
      %s30 = sshll.u32 %s1, 4
      %s31 = int_to_ptr.hbm [resolvable:$true] %s30
      %s32 = sshll.u32 [#allocation5], 4
      %s33 = int_to_ptr.vmem [resolvable:$true] %s32
      %38 = dma.hbm_to_vmem [thread:$0]  %s31, 128, %s33, [#allocation6], 64, 64, 4
    $region9: #{tpu_custom_call.1} parent=1 // pred_fallthru
      _
    // Predicated region
    $region10: #{tpu_custom_call.1} parent=1 // pred_check
      _
    $region11: #{tpu_custom_call.1} parent=1 // pred_check_branch
      %40 = sbr.rel (0) target = $region13
    $region12: #{tpu_custom_call.1} parent=1 // pred_region
      %42 = vsyncadd [#allocation6], 0
      %s43 = sshll.u32 %s2, 4
      %s44 = int_to_ptr.hbm [resolvable:$true] %s43
      %s45 = sshll.u32 [#allocation7], 4
      %s46 = int_to_ptr.vmem [resolvable:$true] %s45
      %51 = dma.hbm_to_vmem [thread:$0]  %s44, 384, %s46, [#allocation6], 64, 64, 4
    $region13: #{tpu_custom_call.1} parent=1 // pred_fallthru
      _
    // Predicated region
    $region14: #{tpu_custom_call.1} parent=1 // pred_check
      _
    $region15: #{tpu_custom_call.1} parent=1 // pred_check_branch
      %53 = sbr.rel (0) target = $region17
    $region16: #{tpu_custom_call.1} parent=1 // pred_region
      %55 = vsyncadd [#allocation9], 0
      %s57 = sshll.u32 %s3, 4
      %s58 = int_to_ptr.hbm [resolvable:$true] %s57
      %s59 = sshll.u32 [#allocation8], 4
      %s60 = int_to_ptr.vmem [resolvable:$true] %s59
      %62 = dma.hbm_to_vmem [thread:$0]  %s58, 128, %s60, [#allocation9]
    $region17: #{tpu_custom_call.1} parent=1 // pred_fallthru
      _
    // Predicated region
    $region18: #{tpu_custom_call.1} parent=1 // pred_check
      _
    $region19: #{tpu_custom_call.1} parent=1 // pred_check_branch
      %64 = sbr.rel (0) target = $region21
    $region20: #{tpu_custom_call.1} parent=1 // pred_region
      %66 = dma.done [#allocation3], 512
    $region21: #{tpu_custom_call.1} parent=1 // pred_fallthru
      _
    // Predicated region
    $region22: #{tpu_custom_call.1} parent=1 // pred_check
      _
    $region23: #{tpu_custom_call.1} parent=1 // pred_check_branch
      %68 = sbr.rel (0) target = $region25
    $region24: #{tpu_custom_call.1} parent=1 // pred_region
      %70 = dma.done [#allocation6], 128
    $region25: #{tpu_custom_call.1} parent=1 // pred_fallthru
      _
    // Predicated region
    $region26: #{tpu_custom_call.1} parent=1 // pred_check
      _
    $region27: #{tpu_custom_call.1} parent=1 // pred_check_branch
      %72 = sbr.rel (0) target = $region29
    $region28: #{tpu_custom_call.1} parent=1 // pred_region
      %74 = dma.done [#allocation6], 384
    $region29: #{tpu_custom_call.1} parent=1 // pred_fallthru
      _
    // Predicated region
    $region30: #{tpu_custom_call.1} parent=1 // pred_check
      _
    $region31: #{tpu_custom_call.1} parent=1 // pred_check_branch
      %76 = sbr.rel (0) target = $region33
    $region32: #{tpu_custom_call.1} parent=1 // pred_region
      %78 = dma.done [#allocation9], 128
    $region33: #{tpu_custom_call.1} parent=1 // pred_fallthru
      _
    %v80 = vld [vmem:[#allocation2] sm:$0xff]
    %v81 = vld [vmem:[#allocation2 + $0x10] sm:$0xff]
    %v82 = vld [vmem:[#allocation2 + $0x8] sm:$0xff]
    %v83 = vld [vmem:[#allocation2 + $0x18] sm:$0xff]
    %v84 = vld [vmem:[#allocation5] sm:$0xf]
    %v85 = vld [vmem:[#allocation5 + $0x4] sm:$0xf]
    %v86 = vunpack.c.l.bf16 %v84
    %v87 = vunpack.c.l.bf16 %v85
    %v88 = vld [vmem:[#allocation7] sm:$0xf]
    %v89 = vld [vmem:[#allocation7 + $0x4] sm:$0xf]
    %v90 = vld [vmem:[#allocation7 + $0x8] sm:$0xf]
    %v91 = vld [vmem:[#allocation7 + $0xc] sm:$0xf]
    %v92 = vld [vmem:[#allocation7 + $0x10] sm:$0xf]
    %v93 = vld [vmem:[#allocation7 + $0x14] sm:$0xf]
    %v94 = vld [vmem:[#allocation8] sm:$0x1]
    %v95 = vld [vmem:[#allocation8 + $0x1] sm:$0x1]
    %v96 = vld [vmem:[#allocation8 + $0x2] sm:$0x1]
    %v97 = vperm.slane %v94, 0
    %v100 = vunpack.c.l.b16 %v84
    %v101 = vunpack.c.l.b16 %v85
    %v102 = vpack.c.b16 %v101, %v100
    %v107 = vunpack.c.l.b16 %v88
    %v108 = vunpack.c.l.b16 %v89
    %v109 = vunpack.c.l.b16 %v90
    %v110 = vunpack.c.l.b16 %v91
    %v111 = vpack.c.b16 %v108, %v107
    %v112 = vpack.c.b16 %v110, %v109
    %vm115 = vcmask 261120
    %v117 = vsel %vm115, %v102, 0
    %119 = vmatpush.bf16.msra.mxu0 0
    %120 = vmatpush.bf16.msra.mxu0 0
    %121 = vmatpush.bf16.msra.mxu0 0
    %122 = vmatpush.bf16.msra.mxu0 0
    %123 = vmatpush.bf16.msra.mxu0 0
    %124 = vmatpush.bf16.msra.mxu0 0
    %125 = vmatpush.bf16.msra.mxu0 %v112
    %126 = vmatpush.bf16.msra.mxu0 %v111
    %127 = vmatmul.bf16.gmra.mxu0 %v117
    %v128 = vpop.f32.mrf.mxu0
    %v129 = vadd.f32 %v97, %v128
    %v130 = vpop.f32.mrf.mxu0
    %v131 = vadd.f32 %v97, %v130
    %132 = vdwg.mxu0
    %v133 = vmax.f32 %v129, 0.0
    %v134 = vmax.f32 %v131, 0.0
    %v135 = vpack.c.bf16 %v134, %v133
    %v136 = vperm.slane %v95, 0
    %137 = vrot.lane.b32.xlu0 %v111, 96
    %v138 = vpop.permute.xlu0 %137
    %139 = vrot.lane.b32.xlu0 %v112, 96
    %v140 = vpop.permute.xlu0 %139
    %v144 = vsel %vm115, %v135, 0
    %146 = vmatpush.bf16.msra.mxu0 0
    %147 = vmatpush.bf16.msra.mxu0 0
    %148 = vmatpush.bf16.msra.mxu0 0
    %149 = vmatpush.bf16.msra.mxu0 0
    %150 = vmatpush.bf16.msra.mxu0 0
    %151 = vmatpush.bf16.msra.mxu0 0
    %152 = vmatpush.bf16.msra.mxu0 %v140
    %153 = vmatpush.bf16.msra.mxu0 %v138
    %154 = vmatmul.bf16.gmra.mxu0 %v144
    %v155 = vpop.f32.mrf.mxu0
    %v156 = vadd.f32 %v136, %v155
    %v157 = vpop.f32.mrf.mxu0
    %v158 = vadd.f32 %v136, %v157
    %159 = vdwg.mxu0
    %v160 = vmul.f32 %v156, 0.5
    %v161 = vmul.f32 %v158, 0.5
    %v162 = vmul.f32 %v160, 1.442695
    %v163 = vpow.pop %v162
    %v164 = vmul.f32 %v161, 1.442695
    %v165 = vpow.pop %v164
    %168 = vrot.lane.b32.xlu0 %v163, 112
    %v169 = vpop.permute.xlu0 %168
    %170 = vrot.lane.b32.xlu0 %v165, 112
    %v171 = vpop.permute.xlu0 %170
    %v174 = vmul.f32 %v82, %v169
    %v175 = vmul.f32 %v83, %v171
    %v176 = vadd.f32 %v156, %v174
    %v177 = vadd.f32 %v158, %v175
    %v178 = vpack.c.bf16 %v177, %v176
    %v179 = vperm.slane %v96, 0
    %v182 = vunpack.c.l.b16 %v92
    %v183 = vunpack.c.l.b16 %v93
    %v184 = vpack.c.b16 %v183, %v182
    %vm186 = vcmask 130048
    %v188 = vsel %vm186, %v178, 0
    %190 = vmatpush.bf16.msra.mxu0 0
    %191 = vmatpush.bf16.msra.mxu0 0
    %192 = vmatpush.bf16.msra.mxu0 0
    %193 = vmatpush.bf16.msra.mxu0 0
    %194 = vmatpush.bf16.msra.mxu0 0
    %195 = vmatpush.bf16.msra.mxu0 0
    %196 = vmatpush.bf16.msra.mxu0 0
    %197 = vmatpush.bf16.msra.mxu0 %v184
    %198 = vmatmul.bf16.gmra.mxu0 %v188
    %v199 = vpop.f32.mrf.mxu0
    %v200 = vadd.f32 %v179, %v199
    %v201 = vpop.f32.mrf.mxu0
    %v202 = vadd.f32 %v179, %v201
    %203 = vdwg.mxu0
    %v204 = vmax.f32 %v200, 0.0
    %v205 = vmax.f32 %v202, 0.0
    %v206 = vpack.c.bf16 %v205, %v204
    %207 = vrot.lane.b32.xlu0 %v111, 64
    %v208 = vpop.permute.xlu0 %207
    %209 = vrot.lane.b32.xlu0 %v112, 64
    %v210 = vpop.permute.xlu0 %209
    %v214 = vsel %vm115, %v206, 0
    %216 = vmatpush.bf16.msra.mxu0 0
    %217 = vmatpush.bf16.msra.mxu0 0
    %218 = vmatpush.bf16.msra.mxu0 0
    %219 = vmatpush.bf16.msra.mxu0 0
    %220 = vmatpush.bf16.msra.mxu0 0
    %221 = vmatpush.bf16.msra.mxu0 0
    %222 = vmatpush.bf16.msra.mxu0 %v210
    %223 = vmatpush.bf16.msra.mxu0 %v208
    %224 = vmatmul.bf16.gmra.mxu0 %v214
    %v225 = vpop.f32.mrf.mxu0
    %v226 = vadd.f32 %v80, %v225
    %v227 = vpop.f32.mrf.mxu0
    %v228 = vadd.f32 %v81, %v227
    %229 = vdwg.mxu0
    %232 = vrot.lane.b32.xlu0 %v80, 64
    %v233 = vpop.permute.xlu0 %232
    %234 = vrot.lane.b32.xlu0 %v81, 64
    %v235 = vpop.permute.xlu0 %234
    %v238 = vsub.f32 %v226, %v233
    %v239 = vsub.f32 %v228, %v235
    %242 = vrot.lane.b32.xlu0 %v86, 96
    %v243 = vpop.permute.xlu0 %242
    %244 = vrot.lane.b32.xlu0 %v87, 96
    %v245 = vpop.permute.xlu0 %244
    %v248 = vmul.f32 %v238, %v243
    %v249 = vmul.f32 %v239, %v245
    %v250 = vmul.f32 %v248, %v248
    %v251 = vmul.f32 %v249, %v249
    %vm252 = vcmask 523264
    %v253 = vsel %vm252, %v250, 0.0
    %v254 = vsel %vm252, %v251, 0.0
    %v255 = vadd.f32 %v253, %v254
    %256 = vadd.xlane.f32.xlu0 %v255
    %v257 = vpop.xlane.xlu0 %256
    %v258 = vrot.slane %v257, 4
    %v259 = vadd.f32 %v257, %v258
    %v260 = vrot.slane %v259, 2
    %v261 = vadd.f32 %v259, %v260
    %v262 = vrot.slane %v261, 1
    %v263 = vadd.f32 %v261, %v262
    %s264 = vtos %v263
    %v265 = vstv %s264
    %266 = vst [vmem:[#allocation10] sm:$0xff] %v265
    // Predicated region
    $region34: #{tpu_custom_call.1} parent=1 // pred_check
      _
    $region35: #{tpu_custom_call.1} parent=1 // pred_check_branch
      %268 = sbr.rel (0) target = $region37
    $region36: #{tpu_custom_call.1} parent=1 // pred_region
      %270 = vsyncadd [#allocation4], 0
      %s272 = sshll.u32 [#allocation10], 4
      %s273 = int_to_ptr.vmem [resolvable:$true] %s272
      %s274 = sshll.u32 %s4, 4
      %s275 = int_to_ptr.hbm [resolvable:$true] %s274
      %277 = dma.vmem_to_hbm [thread:$0]  %s273, 128, %s275, [#allocation4]
    $region37: #{tpu_custom_call.1} parent=1 // pred_fallthru
      _
    // Predicated region
    $region38: #{tpu_custom_call.1} parent=1 // pred_check
      _
    $region39: #{tpu_custom_call.1} parent=1 // pred_check_branch
      %279 = sbr.rel (0) target = $region41
    $region40: #{tpu_custom_call.1} parent=1 // pred_region
      %281 = dma.done [#allocation4], 128
    $region41: #{tpu_custom_call.1} parent=1 // pred_fallthru
      _
    %282 = vsyncpa [#allocation3], 1
    %283 = vsyncpa [#allocation6], 1
    %284 = vsyncpa [#allocation9], 1
    %285 = vsyncpa [#allocation4], 1

</llo_original>
